<compile_context>
chip_gen: v6e
topology: v6e:2x2x1
jax: 0.10.0
libtpu: 0.0.40
codegen_flags: <defaults>
</compile_context>

<pallas_src>
import functools
import math

import jax
import jax.numpy as jnp
import numpy as np
from jax.experimental import pallas as pl
from jax.experimental.pallas import tpu as pltpu


def _round_up(x, m):
    return ((x + m - 1) // m) * m


# ------------------------------ kernel bodies ------------------------------ #
def _finalize(acc, power, freq_pad):
    """acc: (tm, 2*freq_pad) f32 laid out as [re | im]."""
    if power is None:
        return acc                               # raw (re, im); split outside
    re = acc[:, :freq_pad]
    im = acc[:, freq_pad:]
    mag2 = re * re + im * im
    if power == 2.0:
        return mag2
    if power == 1.0:
        return jnp.sqrt(mag2)
    return jnp.power(mag2, 0.5 * float(power))


def _chunked_kernel(chunks_ref, w_ref, out_ref, *, tm, r, rpad, power, freq_pad):
    """In-kernel framing.  chunks_ref is the whole (n_rows, hop) chunk matrix of
    one batch row (VMEM-resident across the frame-tile axis); this grid step
    produces frames [j*tm, (j+1)*tm)."""
    base = pl.multiple_of(pl.program_id(1) * tm, tm)
    ext = chunks_ref[pl.ds(base, tm + rpad), :]            # (tm+rpad, hop) f32
    acc = None
    for s in range(r):                                     # r = n_fft // hop (static)
        c = ext[s:s + tm, :].astype(jnp.bfloat16)          # (tm, hop) bf16
        part = jnp.dot(c, w_ref[s], preferred_element_type=jnp.float32)
        acc = part if acc is None else acc + part
    out_ref[...] = _finalize(acc, power, freq_pad).astype(out_ref.dtype)


def _gather_kernel(frames_ref, w_ref, out_ref, *, power, freq_pad):
    acc = jnp.dot(frames_ref[...], w_ref[...], preferred_element_type=jnp.float32)
    out_ref[...] = _finalize(acc, power, freq_pad).astype(out_ref.dtype)


# ----------------------------- module equivalent --------------------------- #
class SpectrogramPallas:
    """JAX/Pallas equivalent of the torchsignal/torchaudio Spectrogram module."""

    _TM_GATHER = 512                       # frame rows per tile (gather path)
    _TM_CHUNK = 256                        # frame rows per tile (in-kernel framing)
    _CHUNK_VMEM_BUDGET = 8 * 1024 * 1024   # max resident chunk bytes per batch row
    _VMEM_LIMIT = 48 * 1024 * 1024         # safe on v5e/v6e (128 MiB) and v7x (64 MiB)

    def __init__(self, n_fft=400, win_length=None, hop_length=None, pad=0,
                 power=2.0, normalized=False):
        self.n_fft = n_fft
        self.win_length = win_length if win_length is not None else n_fft
        self.hop_length = hop_length if hop_length is not None else self.win_length // 2
        self.pad = pad
        self.power = power
        self.normalized = normalized

        # Periodic Hann window (torch.hann_window default), center-padded to n_fft.
        n = np.arange(self.win_length, dtype=np.float64)
        window = 0.5 * (1.0 - np.cos(2.0 * np.pi * n / self.win_length))
        if self.win_length < self.n_fft:
            left = (self.n_fft - self.win_length) // 2
            w_full = np.zeros(self.n_fft, dtype=np.float64)
            w_full[left:left + self.win_length] = window
        else:
            w_full = window
        self.window = jnp.asarray(w_full, dtype=jnp.float32)

        # Fused, lane-dense, window-weighted real-DFT basis:
        #   columns [0, freq)                      -> Re basis
        #   columns [freq_pad, freq_pad + freq)    -> Im basis
        freq = self.n_fft // 2 + 1
        self.freq = freq
        self._freq_pad = _round_up(freq, 128)
        nn = np.arange(self.n_fft, dtype=np.float64)[:, None]
        kk = np.arange(freq, dtype=np.float64)[None, :]
        ang = 2.0 * np.pi * nn * kk / self.n_fft
        w = np.zeros((self.n_fft, 2 * self._freq_pad), dtype=np.float64)
        w[:, :freq] = w_full[:, None] * np.cos(ang)
        w[:, self._freq_pad:self._freq_pad + freq] = -(w_full[:, None] * np.sin(ang))
        if self.normalized:
            w *= 1.0 / math.sqrt(float(np.sum(w_full ** 2)))

        self.w2 = jnp.asarray(w, dtype=jnp.bfloat16)          # (n_fft, 2*freq_pad)
        if self.hop_length > 0 and self.n_fft % self.hop_length == 0:
            self._r = self.n_fft // self.hop_length
            self.w3 = jnp.asarray(
                w.reshape(self._r, self.hop_length, 2 * self._freq_pad),
                dtype=jnp.bfloat16)                           # (r, hop, 2*freq_pad)
        else:
            self._r = None
            self.w3 = None

    # -------------------- in-kernel framing (chunked) path ------------------ #
    def _chunked_path(self, x, B, n_frames):
        hop, n_fft, r = self.hop_length, self.n_fft, self._r
        fp = self._freq_pad
        C = 2 * fp if self.power is None else fp
        tm = min(self._TM_CHUNK, _round_up(max(n_frames, 1), 8))
        nfp = _round_up(n_frames, tm)
        rpad = _round_up(r - 1, 8) if r > 1 else 0
        n_rows = nfp + rpad
        need = n_rows * hop
        T_tot = x.shape[1]
        if need > T_tot:
            x = jnp.pad(x, ((0, 0), (0, need - T_tot)))
        else:
            x = x[:, :need]
        chunks = x.reshape(B, n_rows, hop)                    # f32, same bytes as waveform

        grid = (B, nfp // tm)
        kernel = functools.partial(_chunked_kernel, tm=tm, r=r, rpad=rpad,
                                   power=self.power, freq_pad=fp)
        cost = pl.CostEstimate(
            flops=int(2 * B * nfp * n_fft * 2 * fp),
            transcendentals=0,
            bytes_accessed=int(chunks.size * 4 + self.w3.size * 2 + B * nfp * C * 4))
        out = pl.pallas_call(
            kernel,
            out_shape=jax.ShapeDtypeStruct((B, nfp, C), jnp.float32),
            grid_spec=pltpu.PrefetchScalarGridSpec(
                num_scalar_prefetch=0,
                grid=grid,
                in_specs=[
                    # whole per-batch chunk matrix, resident across frame tiles
                    pl.BlockSpec((None, n_rows, hop), lambda b, j: (b, 0, 0)),
                    # fused lane-dense DFT basis (resident)
                    pl.BlockSpec((r, hop, 2 * fp), lambda b, j: (0, 0, 0)),
                ],
                out_specs=pl.BlockSpec((None, tm, C), lambda b, j: (b, j, 0)),
            ),
            compiler_params=pltpu.CompilerParams(
                dimension_semantics=("parallel", "parallel"),
                vmem_limit_bytes=self._VMEM_LIMIT),
            cost_estimate=cost,
        )(chunks, self.w3)
        return out[:, :n_frames]                              # (B, n_frames, C)

    # -------------------------- gather fallback path ------------------------ #
    def _gather_path(self, x, B, n_frames):
        hop, n_fft = self.hop_length, self.n_fft
        fp = self._freq_pad
        C = 2 * fp if self.power is None else fp
        idx = (jnp.arange(n_frames)[:, None] * hop
               + jnp.arange(n_fft)[None, :])
        frames = x[:, idx].reshape(B * n_frames, n_fft).astype(jnp.bfloat16)
        M = B * n_frames
        tm = min(self._TM_GATHER, _round_up(M, 8))
        M_pad = _round_up(M, tm)
        if M_pad != M:
            frames = jnp.pad(frames, ((0, M_pad - M), (0, 0)))
        grid = (M_pad // tm,)
        kernel = functools.partial(_gather_kernel, power=self.power, freq_pad=fp)
        cost = pl.CostEstimate(
            flops=int(2 * M_pad * n_fft * 2 * fp),
            transcendentals=0,
            bytes_accessed=int(frames.size * 2 + self.w2.size * 2 + M_pad * C * 4))
        out = pl.pallas_call(
            kernel,
            out_shape=jax.ShapeDtypeStruct((M_pad, C), jnp.float32),
            grid_spec=pltpu.PrefetchScalarGridSpec(
                num_scalar_prefetch=0,
                grid=grid,
                in_specs=[
                    pl.BlockSpec((tm, n_fft), lambda i: (i, 0)),
                    pl.BlockSpec((n_fft, 2 * fp), lambda i: (0, 0)),
                ],
                out_specs=pl.BlockSpec((tm, C), lambda i: (i, 0)),
            ),
            compiler_params=pltpu.CompilerParams(
                dimension_semantics=("parallel",),
                vmem_limit_bytes=self._VMEM_LIMIT),
            cost_estimate=cost,
        )(frames, self.w2)
        return out[:M].reshape(B, n_frames, C)

    # ------------------------------- forward -------------------------------- #
    def __call__(self, waveform):
        """waveform (..., time) -> (..., freq, n_frames) or (..., freq, n_frames, 2)."""
        waveform = jnp.asarray(waveform, dtype=jnp.float32)
        if self.pad > 0:
            waveform = jnp.pad(
                waveform,
                [(0, 0)] * (waveform.ndim - 1) + [(self.pad, self.pad)],
                mode="constant")
        shape = waveform.shape
        x = waveform.reshape(-1, shape[-1])
        B, T = x.shape

        # center=True with reflect padding (torch.stft default in this module).
        half = self.n_fft // 2
        x = jnp.pad(x, ((0, 0), (half, half)), mode="reflect")
        T_tot = T + 2 * half
        n_frames = 1 + (T_tot - self.n_fft) // self.hop_length
        freq, fp = self.freq, self._freq_pad

        use_chunked = self.w3 is not None
        if use_chunked:
            est_rows = _round_up(n_frames, 8) + self._TM_CHUNK + 8
            use_chunked = est_rows * self.hop_length * 4 <= self._CHUNK_VMEM_BUDGET

        if use_chunked:
            raw = self._chunked_path(x, B, n_frames)          # (B, n_frames, C)
        else:
            raw = self._gather_path(x, B, n_frames)           # (B, n_frames, C)

        if self.power is None:
            re = raw[..., :freq]
            im = raw[..., fp:fp + freq]
            spec = jnp.stack([re, im], axis=-1)               # (B, nF, freq, 2)
            spec = jnp.transpose(spec, (0, 2, 1, 3))          # (B, freq, nF, 2)
            return spec.reshape(shape[:-1] + (freq, n_frames, 2))

        spec = raw[..., :freq]                                # (B, nF, freq)
        spec = jnp.swapaxes(spec, -1, -2)                     # (B, freq, nF)
        return spec.reshape(shape[:-1] + (freq, n_frames))


# ----------------------------------- main ----------------------------------- #
if __name__ == "__main__":
    key = jax.random.PRNGKey(0)
    x = jax.random.normal(key, (2, 4, 256), dtype=jnp.float32)

    def reference(xin, n_fft, hop, window, power):
        half = n_fft // 2
        B = int(np.prod(xin.shape[:-1]))
        T = xin.shape[-1]
        xf = jnp.pad(xin.reshape(B, T), ((0, 0), (half, half)), mode="reflect")
        n_frames = 1 + (T + 2 * half - n_fft) // hop
        idx = jnp.arange(n_frames)[:, None] * hop + jnp.arange(n_fft)[None, :]
        fr = xf[:, idx] * window[None, None, :]
        spec_c = jnp.fft.rfft(fr, n=n_fft, axis=-1)           # (B, nF, freq)
        if power is None:
            spec = jnp.stack([spec_c.real, spec_c.imag], axis=-1)
            spec = jnp.transpose(spec, (0, 2, 1, 3))
            return spec.reshape(xin.shape[:-1] + spec.shape[-3:])
        spec = jnp.abs(spec_c) ** power
        spec = jnp.swapaxes(spec, -1, -2)
        return spec.reshape(xin.shape[:-1] + spec.shape[-2:])

    def rel_err(got, ref):
        return float(jnp.max(jnp.abs(got - ref))) / (float(jnp.max(jnp.abs(ref))) + 1e-6)

    # 1) In-kernel framing path (hop divides n_fft), power spectrogram.
    m1 = SpectrogramPallas(n_fft=64, win_length=64, hop_length=32, power=2.0)
    o1 = jax.block_until_ready(m1(x))
    assert o1.shape == (2, 4, 33, 9), o1.shape
    e1 = rel_err(o1, reference(x, 64, 32, m1.window, 2.0))
    assert e1 < 5e-2, f"chunked-path relative error too large: {e1}"

    # 2) Gather fallback path (hop does not divide n_fft), magnitude spectrogram.
    m2 = SpectrogramPallas(n_fft=64, hop_length=48, power=1.0)
    o2 = jax.block_until_ready(m2(x))
    assert o2.shape == (2, 4, 33, 6), o2.shape
    e2 = rel_err(o2, reference(x, 64, 48, m2.window, 1.0))
    assert e2 < 5e-2, f"gather-path relative error too large: {e2}"

    # 3) power=None -> raw (real, imag) spectrum, shape (..., freq, time, 2).
    m3 = SpectrogramPallas(n_fft=64, hop_length=32, power=None)
    o3 = jax.block_until_ready(m3(x))
    assert o3.shape == (2, 4, 33, 9, 2), o3.shape
    e3 = rel_err(o3, reference(x, 64, 32, m3.window, None))
    assert e3 < 5e-2, f"complex-path relative error too large: {e3}"

    print("KERNEL_OK")
</pallas_src>

<mosaic_0001>
module attributes {stable_mosaic.version = 11 : i64} {
  func.func @_chunked_kernel(%arg0: i32, %arg1: i32, %arg2: memref<1x24x32xf32, #tpu.memory_space<vmem>>, %arg3: memref<2x32x256xbf16, #tpu.memory_space<vmem>>, %arg4: memref<1x16x128xf32, #tpu.memory_space<vmem>>) attributes {dimension_semantics = [#tpu.dimension_semantics<parallel>, #tpu.dimension_semantics<parallel>], iteration_bounds = array<i64: 8, 1>, scalar_prefetch = 0 : i64, scratch_operands = 0 : i64, tpu.core_type = #tpu.core_type<tc>, window_params = [{transform_indices = @transform_0, window_bounds = array<i64: 1, 24, 32>}, {pipeline_mode = #tpu.pipeline_mode<synchronous>, transform_indices = @transform_1, window_bounds = array<i64: 2, 32, 256>}, {transform_indices = @transform_2, window_bounds = array<i64: 1, 16, 128>}]} {
    %c16_i32 = arith.constant 16 : i32
    %0 = arith.muli %arg1, %c16_i32 : i32
    %1 = tpu.assume_multiple %0, 16 : i32
    %c0 = arith.constant 0 : index
    %2 = arith.index_cast %1 : i32 to index
    %c0_0 = arith.constant 0 : index
    %3 = vector.load %arg2[%c0, %2, %c0_0] : memref<1x24x32xf32, #tpu.memory_space<vmem>>, vector<1x24x32xf32>
    %4 = vector.shape_cast %3 : vector<1x24x32xf32> to vector<24x32xf32>
    %5 = vector.extract_strided_slice %4 {offsets = [0, 0], sizes = [16, 32], strides = [1, 1]} : vector<24x32xf32> to vector<16x32xf32>
    %6 = arith.truncf %5 : vector<16x32xf32> to vector<16x32xbf16>
    %c0_1 = arith.constant 0 : index
    %c0_2 = arith.constant 0 : index
    %c0_3 = arith.constant 0 : index
    %7 = vector.load %arg3[%c0_1, %c0_2, %c0_3] : memref<2x32x256xbf16, #tpu.memory_space<vmem>>, vector<1x32x256xbf16>
    %8 = vector.shape_cast %7 : vector<1x32x256xbf16> to vector<32x256xbf16>
    %cst = arith.constant dense<0.000000e+00> : vector<16x256xf32>
    %9 = tpu.matmul %6, %8, %cst {dimension_numbers = #tpu.dot_dimension_numbers<[1], [0], [0], [1], [0, 0, 1, 1], [], []>} : vector<16x32xbf16>, vector<32x256xbf16>, vector<16x256xf32> -> vector<16x256xf32>
    %10 = vector.extract_strided_slice %4 {offsets = [1, 0], sizes = [16, 32], strides = [1, 1]} : vector<24x32xf32> to vector<16x32xf32>
    %11 = arith.truncf %10 : vector<16x32xf32> to vector<16x32xbf16>
    %c1 = arith.constant 1 : index
    %c0_4 = arith.constant 0 : index
    %c0_5 = arith.constant 0 : index
    %12 = vector.load %arg3[%c1, %c0_4, %c0_5] : memref<2x32x256xbf16, #tpu.memory_space<vmem>>, vector<1x32x256xbf16>
    %13 = vector.shape_cast %12 : vector<1x32x256xbf16> to vector<32x256xbf16>
    %cst_6 = arith.constant dense<0.000000e+00> : vector<16x256xf32>
    %14 = tpu.matmul %11, %13, %cst_6 {dimension_numbers = #tpu.dot_dimension_numbers<[1], [0], [0], [1], [0, 0, 1, 1], [], []>} : vector<16x32xbf16>, vector<32x256xbf16>, vector<16x256xf32> -> vector<16x256xf32>
    %15 = arith.addf %9, %14 : vector<16x256xf32>
    %16 = vector.extract_strided_slice %15 {offsets = [0, 0], sizes = [16, 128], strides = [1, 1]} : vector<16x256xf32> to vector<16x128xf32>
    %17 = vector.extract_strided_slice %15 {offsets = [0, 128], sizes = [16, 128], strides = [1, 1]} : vector<16x256xf32> to vector<16x128xf32>
    %18 = arith.mulf %16, %16 : vector<16x128xf32>
    %19 = arith.mulf %17, %17 : vector<16x128xf32>
    %20 = arith.addf %18, %19 : vector<16x128xf32>
    %c0_7 = arith.constant 0 : index
    %c0_8 = arith.constant 0 : index
    %c0_9 = arith.constant 0 : index
    %21 = vector.load %arg4[%c0_7, %c0_8, %c0_9] : memref<1x16x128xf32, #tpu.memory_space<vmem>>, vector<1x16x128xf32>
    %22 = vector.shape_cast %21 : vector<1x16x128xf32> to vector<16x128xf32>
    %23 = vector.shape_cast %20 : vector<16x128xf32> to vector<1x16x128xf32>
    tpu.vector_store %arg4[%c0_7, %c0_8, %c0_9], %23 {strides = array<i32>} : memref<1x16x128xf32, #tpu.memory_space<vmem>>, vector<1x16x128xf32>,
    return
  }
  func.func @transform_0(%arg0: i32, %arg1: i32) -> (i32, i32, i32) {
    %c0_i32 = arith.constant 0 : i32
    %c0_i32_0 = arith.constant 0 : i32
    %c0_i32_1 = arith.constant 0 : i32
    return %arg0, %c0_i32, %c0_i32_0 : i32, i32, i32
  }
  func.func @transform_1(%arg0: i32, %arg1: i32) -> (i32, i32, i32) {
    %c0_i32 = arith.constant 0 : i32
    %c0_i32_0 = arith.constant 0 : i32
    %c0_i32_1 = arith.constant 0 : i32
    %c0_i32_2 = arith.constant 0 : i32
    return %c0_i32, %c0_i32_0, %c0_i32_1 : i32, i32, i32
  }
  func.func @transform_2(%arg0: i32, %arg1: i32) -> (i32, i32, i32) {
    %c0_i32 = arith.constant 0 : i32
    %c0_i32_0 = arith.constant 0 : i32
    return %arg0, %arg1, %c0_i32 : i32, i32, i32
  }
}

</mosaic_0001>

<llo_original>
// kernel: tpu_custom_call.1
$region0: #{tpu_custom_call.1}
  #allocation0 [shape = 'u32[]', space=smem, size = 0x4, offset = 0x4, fixed_abs, tag = 'smem constant byte address 0x4 - core index']
  #allocation1 [shape = 'u32[144,128]{1,0:T(1,128)}', space=vmem, size = 0x12000, scoped, tag = 'internal scratch']
  %s0 = inlined_call_operand.hbm [shape: f32[8,24,32], index: 0, kind: input, shape index: {}]
  %s1 = inlined_call_operand.hbm [shape: bf16[2,32,256], index: 1, kind: input, shape index: {}]
  %s2 = inlined_call_operand.hbm [shape: f32[8,16,128], index: 2, kind: output, shape index: {}]
  %s3 = sld [smem:[#allocation0]]
  $region49: #{tpu_custom_call.1} parent=0
    _
  %s5 = ssub.s32 1, %s3
  %s6 = scalar_select 0, %s5, %s3
  $region1: #{tpu_custom_call.1} parent=0
    #allocation2 [shape = 'u8[24576]{0}', space=vmem, size = 0x6000, scoped, tag = 'input window, operand 0']
    #allocation3 [shape = 's32[2]{0}', space=sflag, size = 0x8, scoped, tag = 'scoped memory for tpu_custom_call.1']
    #allocation4 [shape = 's32[2]{0}', space=sflag, size = 0x8, scoped, tag = 'scoped memory for tpu_custom_call.1']
    #allocation5 [shape = 'u8[32768]{0}', space=vmem, size = 0x8000, scoped, tag = 'input window, operand 1, single buffered']
    #allocation6 [shape = 's32[1]{0}', space=sflag, size = 0x4, scoped, tag = 'scoped memory for tpu_custom_call.1']
    #allocation7 [shape = 'u8[16384]{0}', space=vmem, size = 0x4000, scoped, tag = 'output window, operand 0']
    %7 = vsyncpa [#allocation3], 0
    %s8 = scalar_lea.sflag [#allocation3], 1
    %9 = vsyncpa %s8, 0
    %10 = vsyncpa [#allocation6], 0
    %11 = vsyncpa [#allocation4], 0
    %s12 = scalar_lea.sflag [#allocation4], 1
    %13 = vsyncpa %s12, 0
    loop: start=0, step=1, limit=10
    $region2: #{tpu_custom_call.1} parent=1 // loop_pre_header
      _
    $region3: #{tpu_custom_call.1} parent=1 // loop_header
      %s15 = sphi 0, %s19
      %p16 = scmp.ge.s32.totalorder %s15, 10
      %s22 = sphi 0, %s34
      %s23 = sphi 0, %s30
      %s24 = sphi 0, %s22
      %s25 = sphi 0, %s23
      %s26 = sphi 0, %s24
      %s27 = sphi 0, %s25
      %s37 = sphi 0, %s39
      %s40 = sphi 0, %s37
      %s41 = sphi 0, %s40
      %s57 = sphi 0, %s41
      %s61 = sphi 0, %s61
      %s63 = sphi 0, %s61
      %s64 = sphi 0, %s63
      %s78 = sphi 0, %s64
      %s86 = sphi 0, %s88
      %s89 = sphi 0, %s86
      %s90 = sphi 0, %s89
      %s106 = sphi 0, %s90
    $region4: #{tpu_custom_call.1} parent=1 // loop_header_branch
      %18 = sbr.rel (%p16) target = $region8
    $region5: #{tpu_custom_call.1} parent=1 // loop_body
      %s20 = ssub.s32 %s15, 1
      %s21 = ssub.s32 %s15, 2
      %s28 = sadd.s32 1, %s23
      %p29 = scmp.ge.s32.totalorder %s28, 1
      %s30 = scalar_select %p29, 0, %s28
      %s31 = sadd.s32 1, %s22
      %s32 = scalar_select %p29, %s31, %s22
      %p33 = scmp.ge.s32.totalorder %s32, 8
      %s34 = scalar_select %p33, 0, %s32
      %s35 = ssub.s32 %s22, %s34
      %p36 = scmp.eq.s32.totalorder %s35, 0
      %s38 = sadd.s32 %s37, 1
      %s39 = scalar_select %p36, %s37, %s38
      %p42 = pneg %p36
      %p43 = scmp.eq.s32.totalorder %s15, 7
      %p44 = por %p42, %p43
      %p45 = scmp.ne.s32.totalorder %s37, %s40
      %p46 = scmp.eq.s32.totalorder %s15, 0
      %p47 = por %p45, %p46
      %p48 = scmp.ne.s32.totalorder %s37, %s40
      %p49 = scmp.eq.s32.totalorder %s20, 7
      %p50 = por %p48, %p49
      %p51 = scmp.ne.s32.totalorder %s40, %s41
      %p52 = scmp.eq.s32.totalorder %s20, 0
      %p53 = por %p51, %p52
      %p54 = scmp.ne.s32.totalorder %s40, %s41
      %p55 = scmp.eq.s32.totalorder %s21, 7
      %p56 = por %p54, %p55
      %p58 = scmp.ne.s32.totalorder %s41, %s57
      %p59 = scmp.eq.s32.totalorder %s21, 0
      %p60 = por %p58, %p59
      %s62 = sadd.s32 %s61, 1
      %p65 = scmp.eq.s32.totalorder %s15, 7
      %p66 = scmp.ne.s32.totalorder %s61, %s63
      %p67 = scmp.eq.s32.totalorder %s15, 0
      %p68 = por %p66, %p67
      %p69 = scmp.ne.s32.totalorder %s61, %s63
      %p70 = scmp.eq.s32.totalorder %s20, 7
      %p71 = por %p69, %p70
      %p72 = scmp.ne.s32.totalorder %s63, %s64
      %p73 = scmp.eq.s32.totalorder %s20, 0
      %p74 = por %p72, %p73
      %p75 = scmp.ne.s32.totalorder %s63, %s64
      %p76 = scmp.eq.s32.totalorder %s21, 7
      %p77 = por %p75, %p76
      %p79 = scmp.ne.s32.totalorder %s64, %s78
      %p80 = scmp.eq.s32.totalorder %s21, 0
      %p81 = por %p79, %p80
      %s82 = ssub.s32 %s22, %s34
      %s83 = ssub.s32 %s23, %s30
      %s84 = sor.u32 %s82, %s83
      %p85 = scmp.eq.s32.totalorder %s84, 0
      %s87 = sadd.s32 %s86, 1
      %s88 = scalar_select %p85, %s86, %s87
      %p91 = pneg %p85
      %p92 = scmp.eq.s32.totalorder %s15, 7
      %p93 = por %p91, %p92
      %p94 = scmp.ne.s32.totalorder %s86, %s89
      %p95 = scmp.eq.s32.totalorder %s15, 0
      %p96 = por %p94, %p95
      %p97 = scmp.ne.s32.totalorder %s86, %s89
      %p98 = scmp.eq.s32.totalorder %s20, 7
      %p99 = por %p97, %p98
      %p100 = scmp.ne.s32.totalorder %s89, %s90
      %p101 = scmp.eq.s32.totalorder %s20, 0
      %p102 = por %p100, %p101
      %p103 = scmp.ne.s32.totalorder %s89, %s90
      %p104 = scmp.eq.s32.totalorder %s21, 7
      %p105 = por %p103, %p104
      %p107 = scmp.ne.s32.totalorder %s90, %s106
      %p108 = scmp.eq.s32.totalorder %s21, 0
      %p109 = por %p107, %p108
      %p110 = scmp.le.s32.totalorder 1, %s15
      %p111 = scmp.lt.s32.totalorder %s15, 9
      %p112 = pnand %p110, %p111
      %p113 = pneg %p112
      // Predicated region
      $region9: #{tpu_custom_call.1} parent=5 // pred_check
        _
      $region10: #{tpu_custom_call.1} parent=5 // pred_check_branch
        %115 = sbr.rel (%p112) target = $region12
      $region11: #{tpu_custom_call.1} parent=5 // pred_region
        %s116 = ssub.s32 %s15, 1
        // Predicated region
        $region13: #{tpu_custom_call.1} parent=11 // pred_check
          %p117 = pneg %p74
        $region14: #{tpu_custom_call.1} parent=11 // pred_check_branch
          %119 = sbr.rel (%p117) target = $region16
        $region15: #{tpu_custom_call.1} parent=11 // pred_region
          %s121 = ssub.s32 1024, 1024
          %122 = vsyncadd [#allocation6], %s121
          %s123 = sshll.u32 [#allocation5], 4
          %s124 = int_to_ptr.vmem [resolvable:$true] %s123
          %129 = dma.hbm_to_vmem [thread:$0]  %s1, 1024, %s124, [#allocation6], 128, 128, 8
        $region16: #{tpu_custom_call.1} parent=11 // pred_fallthru
          _
      $region12: #{tpu_custom_call.1} parent=5 // pred_fallthru
        _
      %p130 = scmp.lt.s32.totalorder %s15, 8
      // Predicated region
      $region17: #{tpu_custom_call.1} parent=5 // pred_check
        %p131 = pneg %p130
      $region18: #{tpu_custom_call.1} parent=5 // pred_check_branch
        %133 = sbr.rel (%p131) target = $region20
      $region19: #{tpu_custom_call.1} parent=5 // pred_region
        // Predicated region
        $region21: #{tpu_custom_call.1} parent=19 // pred_check
          %p134 = pneg %p47
        $region22: #{tpu_custom_call.1} parent=19 // pred_check_branch
          %136 = sbr.rel (%p134) target = $region24
        $region23: #{tpu_custom_call.1} parent=19 // pred_region
          %s137 = sand.u32 %s37, 1
          %s138 = scalar_lea.sflag [#allocation3], %s137
          %s139 = sand.u32 %s37, 1
          %s140 = smul.addr %s139, 24
          %s141 = scalar_lea.vmem [#allocation2], %s140
          %s143 = ssub.s32 384, 384
          %144 = vsyncadd %s138, %s143
          %s145 = smul.addr %s22, 3
          %s146 = smul.addr %s145, 128
          %s147 = scalar_lea.hbm %s0, %s146
          %s148 = sshll.u32 %s141, 4
          %s149 = int_to_ptr.vmem [resolvable:$true] %s148
          %154 = dma.hbm_to_vmem [thread:$0]  %s147, 384, %s149, %s138, 128, 128, 8
        $region24: #{tpu_custom_call.1} parent=19 // pred_fallthru
          _
      $region20: #{tpu_custom_call.1} parent=5 // pred_fallthru
        _
      %p155 = scmp.le.s32.totalorder 1, %s15
      %p156 = scmp.lt.s32.totalorder %s15, 9
      %p157 = pnand %p155, %p156
      %p158 = pneg %p157
      // Predicated region
      $region25: #{tpu_custom_call.1} parent=5 // pred_check
        _
      $region26: #{tpu_custom_call.1} parent=5 // pred_check_branch
        %160 = sbr.rel (%p157) target = $region28
      $region27: #{tpu_custom_call.1} parent=5 // pred_region
        %s161 = ssub.s32 %s15, 1
        %s162 = sand.u32 %s40, 1
        %s163 = scalar_lea.sflag [#allocation3], %s162
        %s164 = sand.u32 %s40, 1
        %s165 = smul.addr %s164, 24
        %s166 = scalar_lea.vmem [#allocation2], %s165
        // Predicated region
        $region29: #{tpu_custom_call.1} parent=27 // pred_check
          %p167 = pneg %p53
        $region30: #{tpu_custom_call.1} parent=27 // pred_check_branch
          %169 = sbr.rel (%p167) target = $region32
        $region31: #{tpu_custom_call.1} parent=27 // pred_region
          %170 = dma.done %s163, 384
        $region32: #{tpu_custom_call.1} parent=27 // pred_fallthru
          _
        // Predicated region
        $region33: #{tpu_custom_call.1} parent=27 // pred_check
          %p171 = pneg %p74
        $region34: #{tpu_custom_call.1} parent=27 // pred_check_branch
          %173 = sbr.rel (%p171) target = $region36
        $region35: #{tpu_custom_call.1} parent=27 // pred_region
          %174 = dma.done [#allocation6], 1024
        $region36: #{tpu_custom_call.1} parent=27 // pred_fallthru
          _
        %s175 = sand.u32 %s40, 1
        %s176 = scalar_lea.sflag [#allocation3], %s175
        %s177 = sand.u32 %s40, 1
        %s178 = smul.addr %s177, 24
        %s179 = scalar_lea.vmem [#allocation2], %s178
        %p180 = pneg %p53
        %p181 = pneg %p50
        %p182 = pneg %p74
        %p183 = pneg %p71
        %p184 = pneg %p102
        %p185 = pneg %p99
        %s186 = sand.u32 %s89, 1
        %s187 = scalar_lea.sflag [#allocation4], %s186
        %s188 = sand.u32 %s89, 1
        %s189 = smul.addr %s188, 16
        %s190 = scalar_lea.vmem [#allocation7], %s189
        %s191 = smul.u32 2, %s25
        %s193 = smul.u32 %s25, 16
        %s194 = scalar_lea.vmem %s166, %s193 [#allocation2]
        %v195 = vld [vmem:[%s194] sm:$0xff]
        %v196 = vld [vmem:[%s194 + $0x8] sm:$0xff]
        %v197 = vld [vmem:[%s194 + $0x10] sm:$0xff]
        %v198 = vpack.c.bf16 %v196, %v195
        %v199 = vld [vmem:[#allocation5] sm:$0xff]
        %v200 = vld [vmem:[#allocation5 + $0x8] sm:$0xff]
        %v201 = vld [vmem:[#allocation5 + $0x10] sm:$0xff]
        %v202 = vld [vmem:[#allocation5 + $0x18] sm:$0xff]
        %v203 = vpack.c.bf16 %v197, %v197
        %s204 = scalar_lea.vmem [#allocation5], 32
        %v205 = vld [vmem:[%s204] sm:$0xff]
        %v206 = vld [vmem:[%s204 + $0x8] sm:$0xff]
        %v207 = vld [vmem:[%s204 + $0x10] sm:$0xff]
        %v208 = vld [vmem:[%s204 + $0x18] sm:$0xff]
        %vm209 = vsmask.f32 7424
        %v211 = vshrl.u32 %v198, 16
        %v213 = vshll.u32 %v198, 16
        %v215 = vrot.slane %v213, 1
        %v216 = vor.u32 %v211, %v215
        %v218 = vshll.u32 %v203, 16
        %v220 = vrot.slane %v218, 1
        %v221 = vsel %vm209, %v216, %v220
        %v226 = vunpack.c.l.b16 %v205
        %v227 = vunpack.c.h.b16 %v205
        %v228 = vunpack.c.l.b16 %v206
        %v229 = vunpack.c.h.b16 %v206
        %v230 = vunpack.c.l.b16 %v207
        %v231 = vunpack.c.h.b16 %v207
        %v232 = vunpack.c.l.b16 %v208
        %v233 = vunpack.c.h.b16 %v208
        %v234 = vpack.c.b16 %v228, %v226
        %v235 = vpack.c.b16 %v229, %v227
        %v236 = vpack.c.b16 %v232, %v230
        %v237 = vpack.c.b16 %v233, %v231
        %vm242 = vcmask 261120
        %v244 = vsel %vm242, %v221, 0
        %246 = vmatprep.subr.bf16.mxu0 0
        %247 = vmatpush1.bf16.msra.mxu0 0
        %248 = vmatprep.subr.bf16.mxu0 0
        %249 = vmatpush1.bf16.msra.mxu0 0
        %250 = vmatprep.subr.bf16.mxu0 0
        %251 = vmatpush1.bf16.msra.mxu0 0
        %252 = vmatprep.subr.bf16.mxu0 0
        %253 = vmatpush1.bf16.msra.mxu0 0
        %254 = vmatprep.subr.bf16.mxu0 0
        %255 = vmatpush1.bf16.msra.mxu0 0
        %256 = vmatprep.subr.bf16.mxu0 0
        %257 = vmatpush1.bf16.msra.mxu0 0
        %258 = vmatprep.subr.bf16.mxu0 %v237
        %259 = vmatpush1.bf16.msra.mxu0 %v236
        %260 = vmatprep.subr.bf16.mxu0 %v235
        %261 = vmatpush1.bf16.msra.mxu0 %v234
        %262 = vmatprep.subr.bf16.mxu0 0
        %263 = vmatpush2.bf16.msra.mxu0 0
        %264 = vmatprep.subr.bf16.mxu0 0
        %265 = vmatpush2.bf16.msra.mxu0 0
        %266 = vmatprep.subr.bf16.mxu0 0
        %267 = vmatpush2.bf16.msra.mxu0 0
        %268 = vmatprep.subr.bf16.mxu0 0
        %269 = vmatpush2.bf16.msra.mxu0 0
        %270 = vmatprep.subr.bf16.mxu0 0
        %271 = vmatpush2.bf16.msra.mxu0 0
        %272 = vmatprep.subr.bf16.mxu0 0
        %273 = vmatpush2.bf16.msra.mxu0 0
        %274 = vmatprep.subr.bf16.mxu0 0
        %275 = vmatpush2.bf16.msra.mxu0 0
        %276 = vmatprep.subr.bf16.mxu0 0
        %277 = vmatpush2.bf16.msra.mxu0 0
        %278 = vmatprep.mubr.bf16.mxu0 0
        %279 = vmatmul.mubr.bf16.gmra.mxu0 %v244
        %v280 = vpop.f32.mrf.mxu0
        %v281 = vadd.f32 0.0, %v280
        %v282 = vpop.f32.mrf.mxu0
        %v283 = vadd.f32 0.0, %v282
        %v284 = vpop.f32.mrf.mxu0
        %v285 = vadd.f32 0.0, %v284
        %v286 = vpop.f32.mrf.mxu0
        %v287 = vadd.f32 0.0, %v286
        %288 = vdwg.mxu0
        %v293 = vunpack.c.l.b16 %v199
        %v294 = vunpack.c.h.b16 %v199
        %v295 = vunpack.c.l.b16 %v200
        %v296 = vunpack.c.h.b16 %v200
        %v297 = vunpack.c.l.b16 %v201
        %v298 = vunpack.c.h.b16 %v201
        %v299 = vunpack.c.l.b16 %v202
        %v300 = vunpack.c.h.b16 %v202
        %v301 = vpack.c.b16 %v295, %v293
        %v302 = vpack.c.b16 %v296, %v294
        %v303 = vpack.c.b16 %v299, %v297
        %v304 = vpack.c.b16 %v300, %v298
        %v309 = vsel %vm242, %v198, 0
        %311 = vmatprep.subr.bf16.mxu0 0
        %312 = vmatpush1.bf16.msra.mxu0 0
        %313 = vmatprep.subr.bf16.mxu0 0
        %314 = vmatpush1.bf16.msra.mxu0 0
        %315 = vmatprep.subr.bf16.mxu0 0
        %316 = vmatpush1.bf16.msra.mxu0 0
        %317 = vmatprep.subr.bf16.mxu0 0
        %318 = vmatpush1.bf16.msra.mxu0 0
        %319 = vmatprep.subr.bf16.mxu0 0
        %320 = vmatpush1.bf16.msra.mxu0 0
        %321 = vmatprep.subr.bf16.mxu0 0
        %322 = vmatpush1.bf16.msra.mxu0 0
        %323 = vmatprep.subr.bf16.mxu0 %v304
        %324 = vmatpush1.bf16.msra.mxu0 %v303
        %325 = vmatprep.subr.bf16.mxu0 %v302
        %326 = vmatpush1.bf16.msra.mxu0 %v301
        %327 = vmatprep.subr.bf16.mxu0 0
        %328 = vmatpush2.bf16.msra.mxu0 0
        %329 = vmatprep.subr.bf16.mxu0 0
        %330 = vmatpush2.bf16.msra.mxu0 0
        %331 = vmatprep.subr.bf16.mxu0 0
        %332 = vmatpush2.bf16.msra.mxu0 0
        %333 = vmatprep.subr.bf16.mxu0 0
        %334 = vmatpush2.bf16.msra.mxu0 0
        %335 = vmatprep.subr.bf16.mxu0 0
        %336 = vmatpush2.bf16.msra.mxu0 0
        %337 = vmatprep.subr.bf16.mxu0 0
        %338 = vmatpush2.bf16.msra.mxu0 0
        %339 = vmatprep.subr.bf16.mxu0 0
        %340 = vmatpush2.bf16.msra.mxu0 0
        %341 = vmatprep.subr.bf16.mxu0 0
        %342 = vmatpush2.bf16.msra.mxu0 0
        %343 = vmatprep.mubr.bf16.mxu0 0
        %344 = vmatmul.mubr.bf16.gmra.mxu0 %v309
        %v345 = vpop.f32.mrf.mxu0
        %v346 = vadd.f32 %v281, %v345
        %v347 = vpop.f32.mrf.mxu0
        %v348 = vadd.f32 %v283, %v347
        %v349 = vpop.f32.mrf.mxu0
        %v350 = vadd.f32 %v285, %v349
        %v351 = vpop.f32.mrf.mxu0
        %v352 = vadd.f32 %v287, %v351
        %353 = vdwg.mxu0
        %v354 = vmul.f32 %v346, %v346
        %v355 = vmul.f32 %v350, %v350
        %v356 = vmul.f32 %v348, %v348
        %v357 = vmul.f32 %v352, %v352
        %v358 = vadd.f32 %v354, %v356
        %v359 = vadd.f32 %v355, %v357
        %360 = vst [vmem:[%s190] sm:$0xff] %v358
        %361 = vst [vmem:[%s190 + $0x8] sm:$0xff] %v359
        %s362 = sand.u32 %s89, 1
        %s363 = scalar_lea.sflag [#allocation4], %s362
        %s364 = sand.u32 %s89, 1
        %s365 = smul.addr %s364, 16
        %s366 = scalar_lea.vmem [#allocation7], %s365
        // Predicated region
        $region37: #{tpu_custom_call.1} parent=27 // pred_check
          %p367 = pneg %p99
        $region38: #{tpu_custom_call.1} parent=27 // pred_check_branch
          %369 = sbr.rel (%p367) target = $region40
        $region39: #{tpu_custom_call.1} parent=27 // pred_region
          %s370 = smul.u32 2, %s25
          %s372 = ssub.s32 256, 256
          %373 = vsyncadd %s363, %s372
          %s374 = smul.addr %s24, 2
          %s375 = sadd.s32 %s370, %s374
          %s376 = smul.addr %s375, 128
          %s377 = scalar_lea.hbm %s2, %s376
          %s378 = sshll.u32 %s366, 4
          %s379 = int_to_ptr.vmem [resolvable:$true] %s378
          %384 = dma.vmem_to_hbm [thread:$0]  %s379, 256, %s377, %s363, 128, 128, 8
        $region40: #{tpu_custom_call.1} parent=27 // pred_fallthru
          _
      $region28: #{tpu_custom_call.1} parent=5 // pred_fallthru
        _
      %p385 = scmp.le.s32.totalorder 2, %s15
      // Predicated region
      $region41: #{tpu_custom_call.1} parent=5 // pred_check
        %p386 = pneg %p385
      $region42: #{tpu_custom_call.1} parent=5 // pred_check_branch
        %388 = sbr.rel (%p386) target = $region44
      $region43: #{tpu_custom_call.1} parent=5 // pred_region
        %s389 = ssub.s32 %s15, 2
        // Predicated region
        $region45: #{tpu_custom_call.1} parent=43 // pred_check
          %p390 = pneg %p105
        $region46: #{tpu_custom_call.1} parent=43 // pred_check_branch
          %392 = sbr.rel (%p390) target = $region48
        $region47: #{tpu_custom_call.1} parent=43 // pred_region
          %s393 = sand.u32 %s90, 1
          %s394 = scalar_lea.sflag [#allocation4], %s393
          %s395 = sand.u32 %s90, 1
          %s396 = smul.addr %s395, 16
          %s397 = scalar_lea.vmem [#allocation7], %s396
          %398 = dma.done %s394, 256
        $region48: #{tpu_custom_call.1} parent=43 // pred_fallthru
          _
      $region44: #{tpu_custom_call.1} parent=5 // pred_fallthru
        _
    $region6: #{tpu_custom_call.1} parent=1 // loop_footer
      %s19 = sadd.s32 1, %s15
    $region7: #{tpu_custom_call.1} parent=1 // loop_footer_branch
      %14 = sbr.rel target = $region3
    $region8: #{tpu_custom_call.1} parent=1 // loop_exit
      _
    %399 = vsyncpa [#allocation3], 1
    %s400 = scalar_lea.sflag [#allocation3], 1
    %401 = vsyncpa %s400, 1
    %402 = vsyncpa [#allocation6], 1
    %403 = vsyncpa [#allocation4], 1
    %s404 = scalar_lea.sflag [#allocation4], 1
    %405 = vsyncpa %s404, 1

</llo_original>
